<compile_context>
chip_gen: v5e
topology: v5e:2x2
jax: 0.10.0
libtpu: 0.0.40
codegen_flags: <defaults>
</compile_context>

<pallas_src>
import math

import jax
import jax.numpy as jnp
from jax import lax
from jax.experimental import pallas as pl
from jax.experimental.pallas import tpu as pltpu

LANES = 128
TARGET_TILE_ROWS = 4096  # 4096 x 128 x 4B = 2 MiB per f32 input block


def _round_up(x, m):
    return ((x + m - 1) // m) * m


def _make_wing_kernel(w, epsilon, rows, tile_rows):
    c = w * (1.0 - math.log(1.0 + w / epsilon))
    inv_eps = 1.0 / epsilon
    needs_mask = (rows % tile_rows) != 0  # static decision
    groups = tile_rows // 8

    def wing_kernel(pred_ref, truth_ref, out_ref):
        x = truth_ref[...].astype(jnp.float32) - pred_ref[...].astype(jnp.float32)
        ax = jnp.abs(x)
        losses = jnp.where(ax < w, w * jnp.log1p(ax * inv_eps), ax - c)

        if needs_mask:
            # Last block may extend past the array; zero out out-of-bounds rows.
            i = pl.program_id(0)
            row_ids = lax.broadcasted_iota(jnp.int32, (tile_rows, LANES), 0)
            limit = rows - i * tile_rows
            losses = jnp.where(row_ids < limit, losses, 0.0)

        # Sublane-grouped VALU reduce to a single (8, 128) partial tile.
        out_ref[...] = losses.reshape(groups, 8, LANES).sum(axis=0)

    return wing_kernel


def wing_loss(pred, truth, w=10.0, epsilon=2.0, tile_rows_target=TARGET_TILE_ROWS):
    assert pred.shape == truth.shape
    batch = pred.shape[0]  # PyTorch: len(losses) == size of dim 0
    n = pred.size

    pred_f = pred.reshape(-1)
    truth_f = truth.reshape(-1)

    # Pad only when the flat length is not already a multiple of 8*128; the
    # zero padding contributes exactly 0 to the wing-loss sum.
    chunk = 8 * LANES
    pad = (-n) % chunk
    if pad:
        pred_f = jnp.pad(pred_f, (0, pad))
        truth_f = jnp.pad(truth_f, (0, pad))

    rows = (n + pad) // LANES  # multiple of 8
    pred_f = pred_f.reshape(rows, LANES)
    truth_f = truth_f.reshape(rows, LANES)

    tile_rows = min(int(tile_rows_target), rows)
    tile_rows = max(8, (tile_rows // 8) * 8)  # keep a multiple of 8 sublanes
    num_blocks = pl.cdiv(rows, tile_rows)
    grid = (num_blocks,)

    kernel = _make_wing_kernel(float(w), float(epsilon), rows, tile_rows)

    itemsize = jnp.dtype(pred.dtype).itemsize
    partials = pl.pallas_call(
        kernel,
        out_shape=jax.ShapeDtypeStruct((num_blocks * 8, LANES), jnp.float32),
        grid_spec=pltpu.PrefetchScalarGridSpec(
            num_scalar_prefetch=0,
            grid=grid,
            in_specs=[
                pl.BlockSpec((tile_rows, LANES), lambda i: (i, 0)),
                pl.BlockSpec((tile_rows, LANES), lambda i: (i, 0)),
            ],
            out_specs=pl.BlockSpec((8, LANES), lambda i: (i, 0)),
        ),
        compiler_params=pltpu.CompilerParams(
            # Per-block partial sums are independent -> megacore-shardable.
            dimension_semantics=("parallel",),
        ),
        cost_estimate=pl.CostEstimate(
            flops=8 * n,
            transcendentals=n,
            bytes_accessed=2 * n * itemsize + num_blocks * 8 * LANES * 4,
        ),
    )(pred_f, truth_f)

    return jnp.sum(partials) / (batch * 1.0)


def wing_loss_ref(pred, truth, w=10.0, epsilon=2.0):
    # Pure-JAX reference mirroring the PyTorch module.
    x = truth.astype(jnp.float32) - pred.astype(jnp.float32)
    c = w * (1.0 - math.log(1.0 + w / epsilon))
    ax = jnp.abs(x)
    losses = jnp.where(w > ax, w * jnp.log(1.0 + ax / epsilon), ax - c)
    return jnp.sum(losses) / (pred.shape[0] * 1.0)


if __name__ == "__main__":
    key = jax.random.PRNGKey(0)
    k1, k2, k3, k4 = jax.random.split(key, 4)

    # Main test: small NCHW tensors, same convention as the PyTorch module.
    pred = jax.random.normal(k1, (2, 4, 16, 16), dtype=jnp.float32) * 8.0
    truth = jax.random.normal(k2, (2, 4, 16, 16), dtype=jnp.float32) * 8.0
    out = jax.block_until_ready(wing_loss(pred, truth))
    ref = wing_loss_ref(pred, truth)
    assert jnp.allclose(out, ref, rtol=1e-5, atol=1e-5), (out, ref)

    # Ragged-shape test: exercises lane padding + multi-block + row masking
    # (small tile_rows_target forces the masked last-block path).
    pred2 = jax.random.normal(k3, (2, 5, 13, 17), dtype=jnp.float32) * 8.0
    truth2 = jax.random.normal(k4, (2, 5, 13, 17), dtype=jnp.float32) * 8.0
    out2 = jax.block_until_ready(wing_loss(pred2, truth2, tile_rows_target=16))
    ref2 = wing_loss_ref(pred2, truth2)
    assert jnp.allclose(out2, ref2, rtol=1e-5, atol=1e-5), (out2, ref2)

    print("KERNEL_OK")
</pallas_src>

<mosaic_0001>
module attributes {stable_mosaic.version = 11 : i64} {
  func.func @wing_kernel(%arg0: i32, %arg1: memref<16x128xf32, #tpu.memory_space<vmem>>, %arg2: memref<16x128xf32, #tpu.memory_space<vmem>>, %arg3: memref<8x128xf32, #tpu.memory_space<vmem>>) attributes {dimension_semantics = [#tpu.dimension_semantics<parallel>], iteration_bounds = array<i64: 1>, scalar_prefetch = 0 : i64, scratch_operands = 0 : i64, tpu.core_type = #tpu.core_type<tc>, window_params = [{transform_indices = @transform_0, window_bounds = array<i64: 16, 128>}, {transform_indices = @transform_1, window_bounds = array<i64: 16, 128>}, {transform_indices = @transform_2, window_bounds = array<i64: 8, 128>}]} {
    %c0 = arith.constant 0 : index
    %c0_0 = arith.constant 0 : index
    %0 = vector.load %arg2[%c0, %c0_0] : memref<16x128xf32, #tpu.memory_space<vmem>>, vector<16x128xf32>
    %c0_1 = arith.constant 0 : index
    %c0_2 = arith.constant 0 : index
    %1 = vector.load %arg1[%c0_1, %c0_2] : memref<16x128xf32, #tpu.memory_space<vmem>>, vector<16x128xf32>
    %2 = arith.subf %0, %1 : vector<16x128xf32>
    %3 = math.absf %2 : vector<16x128xf32>
    %cst = arith.constant 1.000000e+01 : f32
    %4 = vector.broadcast %cst : f32 to vector<16x128xf32>
    %5 = arith.cmpf olt, %3, %4 : vector<16x128xf32>
    %cst_3 = arith.constant 5.000000e-01 : f32
    %6 = vector.broadcast %cst_3 : f32 to vector<16x128xf32>
    %7 = arith.mulf %3, %6 : vector<16x128xf32>
    %8 = math.log1p %7 : vector<16x128xf32>
    %cst_4 = arith.constant 1.000000e+01 : f32
    %9 = vector.broadcast %cst_4 : f32 to vector<16x128xf32>
    %10 = arith.mulf %9, %8 : vector<16x128xf32>
    %cst_5 = arith.constant -7.9175949 : f32
    %11 = vector.broadcast %cst_5 : f32 to vector<16x128xf32>
    %12 = arith.subf %3, %11 : vector<16x128xf32>
    %13 = arith.select %5, %10, %12 : vector<16x128xi1>, vector<16x128xf32>
    %14 = vector.shape_cast %13 : vector<16x128xf32> to vector<2x8x128xf32>
    %cst_6 = arith.constant dense<0.000000e+00> : vector<8x128xf32>
    %15 = vector.multi_reduction <add>, %14, %cst_6 [0] : vector<2x8x128xf32> to vector<8x128xf32>
    %c0_7 = arith.constant 0 : index
    %c0_8 = arith.constant 0 : index
    %16 = vector.load %arg3[%c0_7, %c0_8] : memref<8x128xf32, #tpu.memory_space<vmem>>, vector<8x128xf32>
    tpu.vector_store %arg3[%c0_7, %c0_8], %15 {strides = array<i32>} : memref<8x128xf32, #tpu.memory_space<vmem>>, vector<8x128xf32>,
    return
  }
  func.func @transform_0(%arg0: i32) -> (i32, i32) {
    %c0_i32 = arith.constant 0 : i32
    %c0_i32_0 = arith.constant 0 : i32
    return %arg0, %c0_i32 : i32, i32
  }
  func.func @transform_1(%arg0: i32) -> (i32, i32) {
    %c0_i32 = arith.constant 0 : i32
    %c0_i32_0 = arith.constant 0 : i32
    return %arg0, %c0_i32 : i32, i32
  }
  func.func @transform_2(%arg0: i32) -> (i32, i32) {
    %c0_i32 = arith.constant 0 : i32
    %c0_i32_0 = arith.constant 0 : i32
    return %arg0, %c0_i32 : i32, i32
  }
}

</mosaic_0001>

<llo_original>
// kernel: tpu_custom_call.1
$region0: #{tpu_custom_call.1}
  #allocation0 [shape = 'u32[]', space=smem, size = 0x4, offset = 0x4, fixed_abs, tag = 'smem constant byte address 0x4 - core index']
  #allocation1 [shape = 'u32[72,128]{1,0:T(1,128)}', space=vmem, size = 0x9000, scoped, tag = 'internal scratch']
  %s0 = inlined_call_operand.hbm [shape: f32[16,128], index: 0, kind: input, shape index: {}]
  %s1 = inlined_call_operand.hbm [shape: f32[16,128], index: 1, kind: input, shape index: {}]
  %s2 = inlined_call_operand.hbm [shape: f32[8,128], index: 2, kind: output, shape index: {}]
  %s3 = sld [smem:[#allocation0]]
  $region26: #{tpu_custom_call.1} parent=0
    _
  %s5 = ssub.s32 1, %s3
  %s6 = scalar_select 0, %s5, %s3
  $region1: #{tpu_custom_call.1} parent=0
    #allocation2 [shape = 'u8[8192]{0}', space=vmem, size = 0x2000, scoped, tag = 'input window, operand 0, single buffered']
    #allocation3 [shape = 's32[1]{0}', space=sflag, size = 0x4, scoped, tag = 'scoped memory for tpu_custom_call.1']
    #allocation4 [shape = 's32[1]{0}', space=sflag, size = 0x4, scoped, tag = 'scoped memory for tpu_custom_call.1']
    #allocation5 [shape = 'u8[8192]{0}', space=vmem, size = 0x2000, scoped, tag = 'input window, operand 1, single buffered']
    #allocation6 [shape = 's32[1]{0}', space=sflag, size = 0x4, scoped, tag = 'scoped memory for tpu_custom_call.1']
    #allocation7 [shape = 'u8[4096]{0}', space=vmem, size = 0x1000, scoped, tag = 'output window, operand 0, single buffered']
    %7 = vsyncpa [#allocation3], 0
    %8 = vsyncpa [#allocation6], 0
    %9 = vsyncpa [#allocation4], 0
    // Predicated region
    $region2: #{tpu_custom_call.1} parent=1 // pred_check
      _
    $region3: #{tpu_custom_call.1} parent=1 // pred_check_branch
      %11 = sbr.rel (0) target = $region5
    $region4: #{tpu_custom_call.1} parent=1 // pred_region
      %13 = vsyncadd [#allocation3], 0
      %s14 = sshll.u32 %s0, 4
      %s15 = int_to_ptr.hbm [resolvable:$true] %s14
      %s16 = sshll.u32 [#allocation2], 4
      %s17 = int_to_ptr.vmem [resolvable:$true] %s16
      %22 = dma.hbm_to_vmem [thread:$0]  %s15, 256, %s17, [#allocation3], 128, 128, 8
    $region5: #{tpu_custom_call.1} parent=1 // pred_fallthru
      _
    // Predicated region
    $region6: #{tpu_custom_call.1} parent=1 // pred_check
      _
    $region7: #{tpu_custom_call.1} parent=1 // pred_check_branch
      %24 = sbr.rel (0) target = $region9
    $region8: #{tpu_custom_call.1} parent=1 // pred_region
      %26 = vsyncadd [#allocation6], 0
      %s27 = sshll.u32 %s1, 4
      %s28 = int_to_ptr.hbm [resolvable:$true] %s27
      %s29 = sshll.u32 [#allocation5], 4
      %s30 = int_to_ptr.vmem [resolvable:$true] %s29
      %35 = dma.hbm_to_vmem [thread:$0]  %s28, 256, %s30, [#allocation6], 128, 128, 8
    $region9: #{tpu_custom_call.1} parent=1 // pred_fallthru
      _
    // Predicated region
    $region10: #{tpu_custom_call.1} parent=1 // pred_check
      _
    $region11: #{tpu_custom_call.1} parent=1 // pred_check_branch
      %37 = sbr.rel (0) target = $region13
    $region12: #{tpu_custom_call.1} parent=1 // pred_region
      %39 = dma.done [#allocation3], 256
    $region13: #{tpu_custom_call.1} parent=1 // pred_fallthru
      _
    // Predicated region
    $region14: #{tpu_custom_call.1} parent=1 // pred_check
      _
    $region15: #{tpu_custom_call.1} parent=1 // pred_check_branch
      %41 = sbr.rel (0) target = $region17
    $region16: #{tpu_custom_call.1} parent=1 // pred_region
      %43 = dma.done [#allocation6], 256
    $region17: #{tpu_custom_call.1} parent=1 // pred_fallthru
      _
    %v44 = vld [vmem:[#allocation5] sm:$0xff]
    %v45 = vld [vmem:[#allocation5 + $0x8] sm:$0xff]
    %v46 = vld [vmem:[#allocation2] sm:$0xff]
    %v47 = vld [vmem:[#allocation2 + $0x8] sm:$0xff]
    %v48 = vsub.f32 %v44, %v46
    %v49 = vsub.f32 %v45, %v47
    %v50 = vand.u32 2147483647, %v48
    %v51 = vand.u32 2147483647, %v49
    %vm52 = vcmp.lt.f32.partialorder %v50, 10.0
    %vm53 = vcmp.lt.f32.partialorder %v51, 10.0
    %v54 = vmul.f32 %v50, 0.5
    %v55 = vmul.f32 %v51, 0.5
    %v56 = vadd.f32 %v54, 1.0
    %v57 = vlog2.pop %v56
    %v58 = vmul.f32 %v57, 0.6931472
    %v59 = vmul.f32 -0.5, %v54
    %v60 = vadd.f32 %v59, 1.0
    %v61 = vmul.f32 %v60, %v54
    %v62 = vand.u32 2147483647, %v54
    %vm63 = vcmp.lt.f32.partialorder %v62, 0.0004427343
    %v64 = vsel %vm63, %v61, %v58
    %v65 = vadd.f32 %v55, 1.0
    %v66 = vlog2.pop %v65
    %v67 = vmul.f32 %v66, 0.6931472
    %v68 = vmul.f32 -0.5, %v55
    %v69 = vadd.f32 %v68, 1.0
    %v70 = vmul.f32 %v69, %v55
    %v71 = vand.u32 2147483647, %v55
    %vm72 = vcmp.lt.f32.partialorder %v71, 0.0004427343
    %v73 = vsel %vm72, %v70, %v67
    %v74 = vmul.f32 %v64, 10.0
    %v75 = vmul.f32 %v73, 10.0
    %v76 = vsub.f32 %v50, -7.917595
    %v77 = vsub.f32 %v51, -7.917595
    %v78 = vsel %vm52, %v74, %v76
    %v79 = vsel %vm53, %v75, %v77
    %v80 = vadd.f32 %v78, %v79
    %81 = vst [vmem:[#allocation7] sm:$0xff] %v80
    // Predicated region
    $region18: #{tpu_custom_call.1} parent=1 // pred_check
      _
    $region19: #{tpu_custom_call.1} parent=1 // pred_check_branch
      %83 = sbr.rel (0) target = $region21
    $region20: #{tpu_custom_call.1} parent=1 // pred_region
      %85 = vsyncadd [#allocation4], 0
      %s87 = sshll.u32 [#allocation7], 4
      %s88 = int_to_ptr.vmem [resolvable:$true] %s87
      %s89 = sshll.u32 %s2, 4
      %s90 = int_to_ptr.hbm [resolvable:$true] %s89
      %92 = dma.vmem_to_hbm [thread:$0]  %s88, 128, %s90, [#allocation4]
    $region21: #{tpu_custom_call.1} parent=1 // pred_fallthru
      _
    // Predicated region
    $region22: #{tpu_custom_call.1} parent=1 // pred_check
      _
    $region23: #{tpu_custom_call.1} parent=1 // pred_check_branch
      %94 = sbr.rel (0) target = $region25
    $region24: #{tpu_custom_call.1} parent=1 // pred_region
      %96 = dma.done [#allocation4], 128
    $region25: #{tpu_custom_call.1} parent=1 // pred_fallthru
      _
    %97 = vsyncpa [#allocation3], 1
    %98 = vsyncpa [#allocation6], 1
    %99 = vsyncpa [#allocation4], 1

</llo_original>
